<compile_context>
chip_gen: v5e
topology: v5e:2x2
jax: 0.10.0
libtpu: 0.0.40
codegen_flags: <defaults>
</compile_context>

<pallas_src>
import functools

import jax
import jax.numpy as jnp
from jax.experimental import pallas as pl
from jax.experimental.pallas import tpu as pltpu

HIDDEN = 64


def _round_up(x, m):
    return pl.cdiv(x, m) * m


def mlp_kernel(x_ref, w1_ref, b1_ref, w2_ref, b2_ref, w3_ref, b3_ref, o_ref):
    # x_ref: (TB, C_in) f32 ; w*: bf16 ; b*: (1, N) f32 ; o_ref: (TB, C_out)
    # bf16 only at the MXU operands; all accumulation / bias / ReLU in f32.
    x_bf = x_ref[...].astype(jnp.bfloat16)

    # Layer 1
    h1 = jnp.dot(x_bf, w1_ref[...], preferred_element_type=jnp.float32)
    h1 = jnp.maximum(h1 + b1_ref[...], 0.0)

    # Layer 2
    h2 = jnp.dot(h1.astype(jnp.bfloat16), w2_ref[...],
                 preferred_element_type=jnp.float32)
    h2 = jnp.maximum(h2 + b2_ref[...], 0.0)

    # Layer 3 (true output width — no lane padding)
    out = jnp.dot(h2.astype(jnp.bfloat16), w3_ref[...],
                  preferred_element_type=jnp.float32)
    o_ref[...] = (out + b3_ref[...]).astype(o_ref.dtype)


def _choose_tb(B, c_in, n_out, out_bytes, tb_max):
    """Pick the batch tile: big enough to amortize per-step overhead, >=2 grid
    steps when possible (v7x megacore), and VMEM-safe on v7x's 64 MiB parts."""
    tb = min(tb_max, _round_up(B, 8))
    # Ensure at least 2 grid steps when there is enough work, so the
    # "parallel" batch axis actually engages both TensorCores on v7x.
    if B >= 16 and tb >= B:
        tb = _round_up(pl.cdiv(B, 2), 8)
    # Keep double-buffered x + out tiles well under the 32 MiB scoped budget.
    bytes_per_row = c_in * 4 + n_out * out_bytes
    budget = 16 << 20
    max_rows = max(8, ((budget // (2 * bytes_per_row)) // 8) * 8)
    return max(8, min(tb, max_rows))


@functools.partial(jax.jit, static_argnames=("tb_max", "out_dtype"))
def mlp_forward(x, params, *, tb_max=8192, out_dtype=jnp.float32):
    """x: [B, C_in] float32; params: dict of w1,b1,w2,b2,w3,b3 (f32, [in,out] layout)."""
    B, c_in = x.shape
    n_out = params["w3"].shape[1]
    out_bytes = jnp.dtype(out_dtype).itemsize

    # bf16 operands for the MXU (tiny arrays, negligible traffic); biases stay f32.
    w1 = params["w1"].astype(jnp.bfloat16)
    w2 = params["w2"].astype(jnp.bfloat16)
    w3 = params["w3"].astype(jnp.bfloat16)
    b1, b2, b3 = params["b1"], params["b2"], params["b3"]

    tb = _choose_tb(B, c_in, n_out, out_bytes, tb_max)
    grid = (pl.cdiv(B, tb),)   # ragged last tile handled by Pallas partial blocks

    def resident(a):
        # Weights/biases: same block every grid step -> stay resident in VMEM.
        nd = a.ndim
        return pl.BlockSpec(a.shape, lambda i: (0,) * nd)

    weight_bytes = (c_in * HIDDEN + HIDDEN * HIDDEN + HIDDEN * n_out) * 2 \
        + (2 * HIDDEN + n_out) * 4
    cost = pl.CostEstimate(
        flops=2 * B * (c_in * HIDDEN + HIDDEN * HIDDEN + HIDDEN * n_out),
        transcendentals=0,
        bytes_accessed=B * c_in * 4 + B * n_out * out_bytes + weight_bytes,
    )

    out = pl.pallas_call(
        mlp_kernel,
        out_shape=jax.ShapeDtypeStruct((B, n_out), out_dtype),
        grid=grid,
        in_specs=[
            pl.BlockSpec((tb, c_in), lambda i: (i, 0)),   # x: tiled over batch, f32
            resident(w1), resident(b1),
            resident(w2), resident(b2),
            resident(w3), resident(b3),
        ],
        out_specs=pl.BlockSpec((tb, n_out), lambda i: (i, 0)),  # true width, no pad
        compiler_params=pltpu.CompilerParams(
            dimension_semantics=("parallel",),            # megacore split on v7x
            vmem_limit_bytes=32 << 20,                    # safe on 64 MiB (v7x) too
        ),
        cost_estimate=cost,
    )(x, w1, b1, w2, b2, w3, b3)

    return out


def init_mlp_params(key, in_channels, out_channels, hidden=HIDDEN):
    """torch.nn.init.normal_ on every parameter -> standard normal."""
    k1, k2, k3, k4, k5, k6 = jax.random.split(key, 6)
    return {
        # stored as [in, out] (transpose of PyTorch's [out, in]) for x @ W
        "w1": jax.random.normal(k1, (in_channels, hidden), jnp.float32),
        "b1": jax.random.normal(k2, (1, hidden), jnp.float32),
        "w2": jax.random.normal(k3, (hidden, hidden), jnp.float32),
        "b2": jax.random.normal(k4, (1, hidden), jnp.float32),
        "w3": jax.random.normal(k5, (hidden, out_channels), jnp.float32),
        "b3": jax.random.normal(k6, (1, out_channels), jnp.float32),
    }


def mlp_reference_f32(x, p):
    h1 = jnp.maximum(x @ p["w1"] + p["b1"], 0.0)
    h2 = jnp.maximum(h1 @ p["w2"] + p["b2"], 0.0)
    return h2 @ p["w3"] + p["b3"]


def mlp_reference_bf16(x, p):
    """Mirrors the kernel's arithmetic (bf16 matmul operands, f32 accum/elementwise)."""
    bf = jnp.bfloat16
    h1 = jnp.dot(x.astype(bf), p["w1"].astype(bf), preferred_element_type=jnp.float32)
    h1 = jnp.maximum(h1 + p["b1"], 0.0)
    h2 = jnp.dot(h1.astype(bf), p["w2"].astype(bf), preferred_element_type=jnp.float32)
    h2 = jnp.maximum(h2 + p["b2"], 0.0)
    out = jnp.dot(h2.astype(bf), p["w3"].astype(bf), preferred_element_type=jnp.float32)
    return out + p["b3"]


if __name__ == "__main__":
    key = jax.random.PRNGKey(0)
    k_params, k_x = jax.random.split(key)

    batch, in_channels, out_channels = 8, 32, 16
    params = init_mlp_params(k_params, in_channels, out_channels)
    x = jax.random.normal(k_x, (batch, in_channels), jnp.float32)

    out = mlp_forward(x, params)
    out = jax.block_until_ready(out)
    assert out.shape == (batch, out_channels)

    # Tight check against a reference that uses the same bf16-in / f32-accum math.
    ref_bf16 = mlp_reference_bf16(x, params)
    assert jnp.allclose(out, ref_bf16, atol=1e-2, rtol=1e-3), "mismatch vs bf16-matched reference"

    # Loose check against the pure-f32 module semantics (bf16 matmul operand precision).
    ref_f32 = mlp_reference_f32(x, params)
    assert jnp.allclose(out, ref_f32, atol=2.0, rtol=5e-2), "mismatch vs f32 reference"

    print("KERNEL_OK")
</pallas_src>

<mosaic_0001>
module attributes {stable_mosaic.version = 11 : i64} {
  func.func @mlp_kernel(%arg0: i32, %arg1: memref<8x32xf32, #tpu.memory_space<vmem>>, %arg2: memref<32x64xbf16, #tpu.memory_space<vmem>>, %arg3: memref<1x64xf32, #tpu.memory_space<vmem>>, %arg4: memref<64x64xbf16, #tpu.memory_space<vmem>>, %arg5: memref<1x64xf32, #tpu.memory_space<vmem>>, %arg6: memref<64x16xbf16, #tpu.memory_space<vmem>>, %arg7: memref<1x16xf32, #tpu.memory_space<vmem>>, %arg8: memref<8x16xf32, #tpu.memory_space<vmem>>) attributes {dimension_semantics = [#tpu.dimension_semantics<parallel>], iteration_bounds = array<i64: 1>, scalar_prefetch = 0 : i64, scratch_operands = 0 : i64, tpu.core_type = #tpu.core_type<tc>, window_params = [{transform_indices = @transform_0, window_bounds = array<i64: 8, 32>}, {pipeline_mode = #tpu.pipeline_mode<synchronous>, transform_indices = @transform_1, window_bounds = array<i64: 32, 64>}, {pipeline_mode = #tpu.pipeline_mode<synchronous>, transform_indices = @transform_2, window_bounds = array<i64: 1, 64>}, {pipeline_mode = #tpu.pipeline_mode<synchronous>, transform_indices = @transform_3, window_bounds = array<i64: 64, 64>}, {pipeline_mode = #tpu.pipeline_mode<synchronous>, transform_indices = @transform_4, window_bounds = array<i64: 1, 64>}, {pipeline_mode = #tpu.pipeline_mode<synchronous>, transform_indices = @transform_5, window_bounds = array<i64: 64, 16>}, {pipeline_mode = #tpu.pipeline_mode<synchronous>, transform_indices = @transform_6, window_bounds = array<i64: 1, 16>}, {transform_indices = @transform_7, window_bounds = array<i64: 8, 16>}]} {
    %c0 = arith.constant 0 : index
    %c0_0 = arith.constant 0 : index
    %0 = vector.load %arg1[%c0, %c0_0] : memref<8x32xf32, #tpu.memory_space<vmem>>, vector<8x32xf32>
    %1 = arith.truncf %0 : vector<8x32xf32> to vector<8x32xbf16>
    %c0_1 = arith.constant 0 : index
    %c0_2 = arith.constant 0 : index
    %2 = vector.load %arg2[%c0_1, %c0_2] : memref<32x64xbf16, #tpu.memory_space<vmem>>, vector<32x64xbf16>
    %cst = arith.constant dense<0.000000e+00> : vector<8x64xf32>
    %3 = tpu.matmul %1, %2, %cst {dimension_numbers = #tpu.dot_dimension_numbers<[1], [0], [0], [1], [0, 0, 1, 1], [], []>} : vector<8x32xbf16>, vector<32x64xbf16>, vector<8x64xf32> -> vector<8x64xf32>
    %c0_3 = arith.constant 0 : index
    %c0_4 = arith.constant 0 : index
    %4 = vector.load %arg3[%c0_3, %c0_4] : memref<1x64xf32, #tpu.memory_space<vmem>>, vector<1x64xf32>
    %5 = vector.broadcast %4 : vector<1x64xf32> to vector<8x64xf32>
    %6 = arith.addf %3, %5 : vector<8x64xf32>
    %cst_5 = arith.constant 0.000000e+00 : f32
    %7 = vector.broadcast %cst_5 : f32 to vector<8x64xf32>
    %8 = arith.maximumf %6, %7 : vector<8x64xf32>
    %9 = arith.truncf %8 : vector<8x64xf32> to vector<8x64xbf16>
    %c0_6 = arith.constant 0 : index
    %c0_7 = arith.constant 0 : index
    %10 = vector.load %arg4[%c0_6, %c0_7] : memref<64x64xbf16, #tpu.memory_space<vmem>>, vector<64x64xbf16>
    %cst_8 = arith.constant dense<0.000000e+00> : vector<8x64xf32>
    %11 = tpu.matmul %9, %10, %cst_8 {dimension_numbers = #tpu.dot_dimension_numbers<[1], [0], [0], [1], [0, 0, 1, 1], [], []>} : vector<8x64xbf16>, vector<64x64xbf16>, vector<8x64xf32> -> vector<8x64xf32>
    %c0_9 = arith.constant 0 : index
    %c0_10 = arith.constant 0 : index
    %12 = vector.load %arg5[%c0_9, %c0_10] : memref<1x64xf32, #tpu.memory_space<vmem>>, vector<1x64xf32>
    %13 = vector.broadcast %12 : vector<1x64xf32> to vector<8x64xf32>
    %14 = arith.addf %11, %13 : vector<8x64xf32>
    %cst_11 = arith.constant 0.000000e+00 : f32
    %15 = vector.broadcast %cst_11 : f32 to vector<8x64xf32>
    %16 = arith.maximumf %14, %15 : vector<8x64xf32>
    %17 = arith.truncf %16 : vector<8x64xf32> to vector<8x64xbf16>
    %c0_12 = arith.constant 0 : index
    %c0_13 = arith.constant 0 : index
    %18 = vector.load %arg6[%c0_12, %c0_13] : memref<64x16xbf16, #tpu.memory_space<vmem>>, vector<64x16xbf16>
    %cst_14 = arith.constant dense<0.000000e+00> : vector<8x16xf32>
    %19 = tpu.matmul %17, %18, %cst_14 {dimension_numbers = #tpu.dot_dimension_numbers<[1], [0], [0], [1], [0, 0, 1, 1], [], []>} : vector<8x64xbf16>, vector<64x16xbf16>, vector<8x16xf32> -> vector<8x16xf32>
    %c0_15 = arith.constant 0 : index
    %c0_16 = arith.constant 0 : index
    %20 = vector.load %arg7[%c0_15, %c0_16] : memref<1x16xf32, #tpu.memory_space<vmem>>, vector<1x16xf32>
    %21 = vector.broadcast %20 : vector<1x16xf32> to vector<8x16xf32>
    %22 = arith.addf %19, %21 : vector<8x16xf32>
    %c0_17 = arith.constant 0 : index
    %c0_18 = arith.constant 0 : index
    %23 = vector.load %arg8[%c0_17, %c0_18] : memref<8x16xf32, #tpu.memory_space<vmem>>, vector<8x16xf32>
    tpu.vector_store %arg8[%c0_17, %c0_18], %22 {strides = array<i32>} : memref<8x16xf32, #tpu.memory_space<vmem>>, vector<8x16xf32>,
    return
  }
  func.func @transform_0(%arg0: i32) -> (i32, i32) {
    %c0_i32 = arith.constant 0 : i32
    %c0_i32_0 = arith.constant 0 : i32
    return %arg0, %c0_i32 : i32, i32
  }
  func.func @transform_1(%arg0: i32) -> (i32, i32) {
    %c0_i32 = arith.constant 0 : i32
    %c0_i32_0 = arith.constant 0 : i32
    %c0_i32_1 = arith.constant 0 : i32
    return %c0_i32, %c0_i32_0 : i32, i32
  }
  func.func @transform_2(%arg0: i32) -> (i32, i32) {
    %c0_i32 = arith.constant 0 : i32
    %c0_i32_0 = arith.constant 0 : i32
    %c0_i32_1 = arith.constant 0 : i32
    return %c0_i32, %c0_i32_0 : i32, i32
  }
  func.func @transform_3(%arg0: i32) -> (i32, i32) {
    %c0_i32 = arith.constant 0 : i32
    %c0_i32_0 = arith.constant 0 : i32
    %c0_i32_1 = arith.constant 0 : i32
    return %c0_i32, %c0_i32_0 : i32, i32
  }
  func.func @transform_4(%arg0: i32) -> (i32, i32) {
    %c0_i32 = arith.constant 0 : i32
    %c0_i32_0 = arith.constant 0 : i32
    %c0_i32_1 = arith.constant 0 : i32
    return %c0_i32, %c0_i32_0 : i32, i32
  }
  func.func @transform_5(%arg0: i32) -> (i32, i32) {
    %c0_i32 = arith.constant 0 : i32
    %c0_i32_0 = arith.constant 0 : i32
    %c0_i32_1 = arith.constant 0 : i32
    return %c0_i32, %c0_i32_0 : i32, i32
  }
  func.func @transform_6(%arg0: i32) -> (i32, i32) {
    %c0_i32 = arith.constant 0 : i32
    %c0_i32_0 = arith.constant 0 : i32
    %c0_i32_1 = arith.constant 0 : i32
    return %c0_i32, %c0_i32_0 : i32, i32
  }
  func.func @transform_7(%arg0: i32) -> (i32, i32) {
    %c0_i32 = arith.constant 0 : i32
    %c0_i32_0 = arith.constant 0 : i32
    return %arg0, %c0_i32 : i32, i32
  }
}

</mosaic_0001>

<llo_original>
// kernel: mlp_forward.1
$region0: #{mlp_forward.1}
  #allocation0 [shape = 'u32[]', space=smem, size = 0x4, offset = 0x4, fixed_abs, tag = 'smem constant byte address 0x4 - core index']
  #allocation1 [shape = 'u32[72,128]{1,0:T(1,128)}', space=vmem, size = 0x9000, scoped, tag = 'internal scratch']
  %s0 = inlined_call_operand.vmem [shape: f32[8,32], index: 0, kind: input, shape index: {}]
  %s1 = inlined_call_operand.vmem [shape: bf16[32,64], index: 1, kind: input, shape index: {}]
  %s2 = inlined_call_operand.vmem [shape: f32[1,64], index: 2, kind: input, shape index: {}]
  %s3 = inlined_call_operand.vmem [shape: bf16[64,64], index: 3, kind: input, shape index: {}]
  %s4 = inlined_call_operand.vmem [shape: f32[1,64], index: 4, kind: input, shape index: {}]
  %s5 = inlined_call_operand.vmem [shape: bf16[64,16], index: 5, kind: input, shape index: {}]
  %s6 = inlined_call_operand.vmem [shape: f32[1,16], index: 6, kind: input, shape index: {}]
  %s7 = inlined_call_operand.hbm [shape: f32[8,16], index: 7, kind: output, shape index: {}]
  %s8 = sld [smem:[#allocation0]]
  $region38: #{mlp_forward.1} parent=0
    _
  %s10 = ssub.s32 1, %s8
  %s11 = scalar_select 0, %s10, %s8
  $region1: #{mlp_forward.1} parent=0
    #allocation2 [shape = 'u8[4096]{0}', space=vmem, size = 0x1000, scoped, tag = 'output window, operand 0, single buffered']
    #allocation3 [shape = 's32[1]{0}', space=sflag, size = 0x4, scoped, tag = 'scoped memory for mlp_forward.1']
    %12 = vsyncpa [#allocation3], 0
    // Predicated region
    $region2: #{mlp_forward.1} parent=1 // pred_check
      _
    $region3: #{mlp_forward.1} parent=1 // pred_check_branch
      %14 = sbr.rel (0) target = $region5
    $region4: #{mlp_forward.1} parent=1 // pred_region
      _
    $region5: #{mlp_forward.1} parent=1 // pred_fallthru
      _
    // Predicated region
    $region6: #{mlp_forward.1} parent=1 // pred_check
      _
    $region7: #{mlp_forward.1} parent=1 // pred_check_branch
      %16 = sbr.rel (0) target = $region9
    $region8: #{mlp_forward.1} parent=1 // pred_region
      _
    $region9: #{mlp_forward.1} parent=1 // pred_fallthru
      _
    // Predicated region
    $region10: #{mlp_forward.1} parent=1 // pred_check
      _
    $region11: #{mlp_forward.1} parent=1 // pred_check_branch
      %18 = sbr.rel (0) target = $region13
    $region12: #{mlp_forward.1} parent=1 // pred_region
      _
    $region13: #{mlp_forward.1} parent=1 // pred_fallthru
      _
    // Predicated region
    $region14: #{mlp_forward.1} parent=1 // pred_check
      _
    $region15: #{mlp_forward.1} parent=1 // pred_check_branch
      %20 = sbr.rel (0) target = $region17
    $region16: #{mlp_forward.1} parent=1 // pred_region
      _
    $region17: #{mlp_forward.1} parent=1 // pred_fallthru
      _
    // Predicated region
    $region18: #{mlp_forward.1} parent=1 // pred_check
      _
    $region19: #{mlp_forward.1} parent=1 // pred_check_branch
      %22 = sbr.rel (0) target = $region21
    $region20: #{mlp_forward.1} parent=1 // pred_region
      _
    $region21: #{mlp_forward.1} parent=1 // pred_fallthru
      _
    // Predicated region
    $region22: #{mlp_forward.1} parent=1 // pred_check
      _
    $region23: #{mlp_forward.1} parent=1 // pred_check_branch
      %24 = sbr.rel (0) target = $region25
    $region24: #{mlp_forward.1} parent=1 // pred_region
      _
    $region25: #{mlp_forward.1} parent=1 // pred_fallthru
      _
    // Predicated region
    $region26: #{mlp_forward.1} parent=1 // pred_check
      _
    $region27: #{mlp_forward.1} parent=1 // pred_check_branch
      %26 = sbr.rel (0) target = $region29
    $region28: #{mlp_forward.1} parent=1 // pred_region
      _
    $region29: #{mlp_forward.1} parent=1 // pred_fallthru
      _
    %v28 = vld [vmem:[%s0] sm:$0xff]
    %v29 = vpack.c.bf16 %v28, %v28
    %v30 = vld [vmem:[%s1] sm:$0xf]
    %v31 = vld [vmem:[%s1 + $0x4] sm:$0xf]
    %v32 = vld [vmem:[%s1 + $0x8] sm:$0xf]
    %v33 = vld [vmem:[%s1 + $0xc] sm:$0xf]
    %v34 = vld [vmem:[%s2] sm:$0x1]
    %v36 = vperm.slane %v34, 0
    %v42 = vunpack.c.l.b16 %v30
    %v43 = vunpack.c.l.b16 %v31
    %v44 = vunpack.c.l.b16 %v32
    %v45 = vunpack.c.l.b16 %v33
    %v46 = vpack.c.b16 %v43, %v42
    %v47 = vpack.c.b16 %v45, %v44
    %vm50 = vcmask 261120
    %v52 = vsel %vm50, %v29, 0
    %54 = vmatpush.bf16.msra.mxu0 0
    %55 = vmatpush.bf16.msra.mxu0 0
    %56 = vmatpush.bf16.msra.mxu0 0
    %57 = vmatpush.bf16.msra.mxu0 0
    %58 = vmatpush.bf16.msra.mxu0 0
    %59 = vmatpush.bf16.msra.mxu0 0
    %60 = vmatpush.bf16.msra.mxu0 %v47
    %61 = vmatpush.bf16.msra.mxu0 %v46
    %62 = vmatmul.bf16.gmra.mxu0 %v52
    %v63 = vpop.f32.mrf.mxu0
    %v64 = vadd.f32 %v36, %v63
    %v65 = vpop.f32.mrf.mxu0
    %66 = vdwg.mxu0
    %v67 = vmax.f32 %v64, 0.0
    %v68 = vpack.c.bf16 %v67, %v67
    %v69 = vld [vmem:[%s3] sm:$0xf]
    %v70 = vld [vmem:[%s3 + $0x4] sm:$0xf]
    %v71 = vld [vmem:[%s3 + $0x8] sm:$0xf]
    %v72 = vld [vmem:[%s3 + $0xc] sm:$0xf]
    %v73 = vld [vmem:[%s3 + $0x10] sm:$0xf]
    %v74 = vld [vmem:[%s3 + $0x14] sm:$0xf]
    %v75 = vld [vmem:[%s3 + $0x18] sm:$0xf]
    %v76 = vld [vmem:[%s3 + $0x1c] sm:$0xf]
    %v77 = vld [vmem:[%s4] sm:$0x1]
    %v79 = vperm.slane %v77, 0
    %v89 = vunpack.c.l.b16 %v69
    %v90 = vunpack.c.l.b16 %v70
    %v91 = vunpack.c.l.b16 %v71
    %v92 = vunpack.c.l.b16 %v72
    %v93 = vunpack.c.l.b16 %v73
    %v94 = vunpack.c.l.b16 %v74
    %v95 = vunpack.c.l.b16 %v75
    %v96 = vunpack.c.l.b16 %v76
    %v97 = vpack.c.b16 %v90, %v89
    %v98 = vpack.c.b16 %v92, %v91
    %v99 = vpack.c.b16 %v94, %v93
    %v100 = vpack.c.b16 %v96, %v95
    %vm105 = vcmask 523264
    %v107 = vsel %vm105, %v68, 0
    %109 = vmatpush.bf16.msra.mxu0 0
    %110 = vmatpush.bf16.msra.mxu0 0
    %111 = vmatpush.bf16.msra.mxu0 0
    %112 = vmatpush.bf16.msra.mxu0 0
    %113 = vmatpush.bf16.msra.mxu0 %v100
    %114 = vmatpush.bf16.msra.mxu0 %v99
    %115 = vmatpush.bf16.msra.mxu0 %v98
    %116 = vmatpush.bf16.msra.mxu0 %v97
    %117 = vmatmul.bf16.gmra.mxu0 %v107
    %v118 = vpop.f32.mrf.mxu0
    %v119 = vadd.f32 %v79, %v118
    %v120 = vpop.f32.mrf.mxu0
    %121 = vdwg.mxu0
    %v122 = vmax.f32 %v119, 0.0
    %v123 = vpack.c.bf16 %v122, %v122
    %v124 = vld [vmem:[%s5] sm:$0xf]
    %v125 = vld [vmem:[%s5 + $0x4] sm:$0xf]
    %v126 = vld [vmem:[%s5 + $0x8] sm:$0xf]
    %v127 = vld [vmem:[%s5 + $0xc] sm:$0xf]
    %v128 = vld [vmem:[%s5 + $0x10] sm:$0xf]
    %v129 = vld [vmem:[%s5 + $0x14] sm:$0xf]
    %v130 = vld [vmem:[%s5 + $0x18] sm:$0xf]
    %v131 = vld [vmem:[%s5 + $0x1c] sm:$0xf]
    %v132 = vld [vmem:[%s6] sm:$0x1]
    %v134 = vperm.slane %v132, 0
    %v144 = vunpack.c.l.b16 %v124
    %v145 = vunpack.c.l.b16 %v125
    %v146 = vunpack.c.l.b16 %v126
    %v147 = vunpack.c.l.b16 %v127
    %v148 = vunpack.c.l.b16 %v128
    %v149 = vunpack.c.l.b16 %v129
    %v150 = vunpack.c.l.b16 %v130
    %v151 = vunpack.c.l.b16 %v131
    %v152 = vpack.c.b16 %v145, %v144
    %v153 = vpack.c.b16 %v147, %v146
    %v154 = vpack.c.b16 %v149, %v148
    %v155 = vpack.c.b16 %v151, %v150
    %v161 = vsel %vm105, %v123, 0
    %163 = vmatpush.bf16.msra.mxu0 0
    %164 = vmatpush.bf16.msra.mxu0 0
    %165 = vmatpush.bf16.msra.mxu0 0
    %166 = vmatpush.bf16.msra.mxu0 0
    %167 = vmatpush.bf16.msra.mxu0 %v155
    %168 = vmatpush.bf16.msra.mxu0 %v154
    %169 = vmatpush.bf16.msra.mxu0 %v153
    %170 = vmatpush.bf16.msra.mxu0 %v152
    %171 = vmatmul.bf16.gmra.mxu0 %v161
    %v172 = vpop.f32.mrf.mxu0
    %v173 = vadd.f32 %v134, %v172
    %v174 = vpop.f32.mrf.mxu0
    %175 = vdwg.mxu0
    %vm176 = vcmask 130048
    %177 = vst.msk [vmem:[#allocation2] sm:$0xff] %vm176, %v173
    // Predicated region
    $region30: #{mlp_forward.1} parent=1 // pred_check
      _
    $region31: #{mlp_forward.1} parent=1 // pred_check_branch
      %179 = sbr.rel (0) target = $region33
    $region32: #{mlp_forward.1} parent=1 // pred_region
      %181 = vsyncadd [#allocation3], 0
      %s183 = sshll.u32 [#allocation2], 4
      %s184 = int_to_ptr.vmem [resolvable:$true] %s183
      %s185 = sshll.u32 %s7, 4
      %s186 = int_to_ptr.hbm [resolvable:$true] %s185
      %188 = dma.vmem_to_hbm [thread:$0]  %s184, 128, %s186, [#allocation3]
    $region33: #{mlp_forward.1} parent=1 // pred_fallthru
      _
    // Predicated region
    $region34: #{mlp_forward.1} parent=1 // pred_check
      _
    $region35: #{mlp_forward.1} parent=1 // pred_check_branch
      %190 = sbr.rel (0) target = $region37
    $region36: #{mlp_forward.1} parent=1 // pred_region
      %192 = dma.done [#allocation3], 128
    $region37: #{mlp_forward.1} parent=1 // pred_fallthru
      _
    %193 = vsyncpa [#allocation3], 1

</llo_original>
